<compile_context>
chip_gen: v7x
topology: tpu7x:2x2x1
jax: 0.10.0
libtpu: 0.0.40
codegen_flags: <defaults>
</compile_context>

<pallas_src>
import jax
import jax.numpy as jnp
from jax.experimental import pallas as pl
from jax.experimental.pallas import tpu as pltpu

NUM_GROUPS = 8
EPS = 1e-6


# ----------------------------- Pallas kernel --------------------------------

def _groupnorm_kernel(x_ref, gamma_ref, beta_ref, o_ref):
    """Fused GroupNorm for `gpb` whole groups of one batch element.

    x_ref:     (1, gpb, cpg, HW)  activation block, HW on lanes (lane-dense).
    gamma_ref: (gpb, cpg, 1)      affine scale (f32).
    beta_ref:  (gpb, cpg, 1)      affine shift (f32).
    o_ref:     (1, gpb, cpg, HW)  output block (input dtype).
    """
    x = x_ref[0].astype(jnp.float32)                        # (gpb, cpg, HW)
    gpb, cpg, hw = x.shape
    inv_n = 1.0 / float(cpg * hw)

    # Pass 1: per-group mean.  Lane reduce (XLU) then sublane reduce.
    s1 = jnp.sum(jnp.sum(x, axis=2, keepdims=True), axis=1, keepdims=True)
    mean = s1 * inv_n                                       # (gpb, 1, 1)

    # Pass 2 (numerically stable): centered sum of squares -> variance.
    d = x - mean
    s2 = jnp.sum(jnp.sum(d * d, axis=2, keepdims=True), axis=1, keepdims=True)
    inv = jax.lax.rsqrt(s2 * inv_n + EPS)                   # (gpb, 1, 1)

    # Fold mean into the bias so the writeback is a single FMA on x
    # (no full-tile `d` temp on the store path).
    scale = inv * gamma_ref[...]                            # (gpb, cpg, 1)
    bias = beta_ref[...] - mean * scale                     # (gpb, cpg, 1)
    o_ref[0] = (x * scale + bias).astype(o_ref.dtype)


# ----------------------------- wrapper ---------------------------------------

def group_norm(x, gamma, beta):
    """PyTorch-equivalent GroupNorm(8, C, eps=1e-6, affine=True) forward.

    x: (N, C, *spatial) in PyTorch (channels-second) layout. Returns same shape/dtype.
    """
    orig_shape = x.shape
    n, c = x.shape[0], x.shape[1]
    assert c % NUM_GROUPS == 0, "channels must be divisible by num_groups=8"
    hw = 1
    for s in x.shape[2:]:
        hw *= s
    cpg = c // NUM_GROUPS

    # (N, G, cpg, HW) view of the contiguous activation tensor (free reshape).
    x4 = x.reshape(n, NUM_GROUPS, cpg, hw)

    # Choose how many whole groups one grid step processes:
    #   - at least ~1 MiB of activation per step (per-step overhead ~0.35 us)
    #   - double-buffered in/out blocks + f32 temps stay well inside VMEM
    #     (v7x only has 64 MiB physical; leave headroom).
    itemsize = x.dtype.itemsize
    slab_bytes = cpg * hw * itemsize                       # one group's activations

    def step_cost(g):
        # 2x input + 2x output double buffers + f32 cast + f32 centered temp.
        return g * cpg * hw * (4 * itemsize + 2 * 4)

    target_min = 1 << 20                                   # ~1 MiB / step
    vmem_budget = 44 << 20                                 # conservative for v7x
    gpb = 1
    while (gpb < NUM_GROUPS
           and NUM_GROUPS % (gpb * 2) == 0
           and gpb * slab_bytes < target_min
           and step_cost(gpb * 2) <= vmem_budget):
        gpb *= 2
    # TODO(synk): if a single group slab exceeds the VMEM budget (very large HW),
    # add an HW grid axis with a two-sweep (stats accumulate, then normalize) scheme.
    assert step_cost(1) <= vmem_budget, "group slab too large; needs HW tiling"

    vmem_limit = int(min(max(2 * step_cost(gpb), 32 << 20), 56 << 20))
    g_steps = NUM_GROUPS // gpb

    gamma3 = gamma.reshape(NUM_GROUPS, cpg, 1).astype(jnp.float32)
    beta3 = beta.reshape(NUM_GROUPS, cpg, 1).astype(jnp.float32)

    out = pl.pallas_call(
        _groupnorm_kernel,
        out_shape=jax.ShapeDtypeStruct((n, NUM_GROUPS, cpg, hw), x.dtype),
        grid=(n, g_steps),
        in_specs=[
            pl.BlockSpec((1, gpb, cpg, hw), lambda i, g: (i, g, 0, 0)),  # activations
            pl.BlockSpec((gpb, cpg, 1), lambda i, g: (g, 0, 0)),         # gamma
            pl.BlockSpec((gpb, cpg, 1), lambda i, g: (g, 0, 0)),         # beta
        ],
        out_specs=pl.BlockSpec((1, gpb, cpg, hw), lambda i, g: (i, g, 0, 0)),
        compiler_params=pltpu.CompilerParams(
            dimension_semantics=("parallel", "parallel"),
            vmem_limit_bytes=vmem_limit),
        cost_estimate=pl.CostEstimate(
            flops=int(7 * n * c * hw),
            transcendentals=int(n * NUM_GROUPS),
            bytes_accessed=int(2 * itemsize * n * c * hw)),
    )(x4, gamma3, beta3)
    return out.reshape(orig_shape)


# ----------------------------- pure-JAX reference ----------------------------

def group_norm_ref(x, gamma, beta):
    n, c = x.shape[0], x.shape[1]
    spatial = x.shape[2:]
    xg = x.astype(jnp.float32).reshape(n, NUM_GROUPS, -1)
    mean = xg.mean(axis=2, keepdims=True)
    var = xg.var(axis=2, keepdims=True)                    # biased, like torch GroupNorm
    y = ((xg - mean) * jax.lax.rsqrt(var + EPS)).reshape((n, c) + spatial)
    gshape = (1, c) + (1,) * len(spatial)
    return (y * gamma.reshape(gshape) + beta.reshape(gshape)).astype(x.dtype)


# ----------------------------- main ------------------------------------------

if __name__ == "__main__":
    N, C, H, W = 2, 32, 16, 16     # channels divisible by 8 (required by GroupNorm(8, C))
    key = jax.random.PRNGKey(0)
    k0, k1, k2 = jax.random.split(key, 3)

    x = 3.0 + 2.0 * jax.random.normal(k0, (N, C, H, W), jnp.float32)   # non-zero mean
    gamma = 1.0 + 0.1 * jax.random.normal(k1, (C,), jnp.float32)
    beta = 0.1 * jax.random.normal(k2, (C,), jnp.float32)

    out = jax.block_until_ready(group_norm(x, gamma, beta))
    ref = group_norm_ref(x, gamma, beta)

    assert out.shape == x.shape and out.dtype == x.dtype, (out.shape, out.dtype)
    err = float(jnp.max(jnp.abs(out - ref)))
    assert err < 1e-4, f"max abs err {err}"
    print("KERNEL_OK")
</pallas_src>

<mosaic_0001>
module attributes {stable_mosaic.version = 11 : i64} {
  func.func @_groupnorm_kernel(%arg0: i32, %arg1: i32, %arg2: memref<1x8x4x256xf32, #tpu.memory_space<vmem>>, %arg3: memref<8x4x1xf32, #tpu.memory_space<vmem>>, %arg4: memref<8x4x1xf32, #tpu.memory_space<vmem>>, %arg5: memref<1x8x4x256xf32, #tpu.memory_space<vmem>>) attributes {dimension_semantics = [#tpu.dimension_semantics<parallel>, #tpu.dimension_semantics<parallel>], iteration_bounds = array<i64: 2, 1>, scalar_prefetch = 0 : i64, scratch_operands = 0 : i64, tpu.core_type = #tpu.core_type<tc>, window_params = [{transform_indices = @transform_0, window_bounds = array<i64: 1, 8, 4, 256>}, {transform_indices = @transform_1, window_bounds = array<i64: 8, 4, 1>}, {transform_indices = @transform_2, window_bounds = array<i64: 8, 4, 1>}, {transform_indices = @transform_3, window_bounds = array<i64: 1, 8, 4, 256>}]} {
    %c0 = arith.constant 0 : index
    %c0_0 = arith.constant 0 : index
    %c0_1 = arith.constant 0 : index
    %c0_2 = arith.constant 0 : index
    %0 = vector.load %arg2[%c0, %c0_0, %c0_1, %c0_2] : memref<1x8x4x256xf32, #tpu.memory_space<vmem>>, vector<1x8x4x256xf32>
    %1 = vector.shape_cast %0 : vector<1x8x4x256xf32> to vector<8x4x256xf32>
    %cst = arith.constant dense<0.000000e+00> : vector<8x4xf32>
    %2 = vector.multi_reduction <add>, %1, %cst [2] : vector<8x4x256xf32> to vector<8x4xf32>
    %3 = vector.shape_cast %2 : vector<8x4xf32> to vector<8x4x1xf32>
    %cst_3 = arith.constant dense<0.000000e+00> : vector<8x1xf32>
    %4 = vector.multi_reduction <add>, %3, %cst_3 [1] : vector<8x4x1xf32> to vector<8x1xf32>
    %5 = vector.shape_cast %4 : vector<8x1xf32> to vector<8x1x1xf32>
    %cst_4 = arith.constant 9.765625E-4 : f32
    %6 = vector.broadcast %cst_4 : f32 to vector<8x1x1xf32>
    %7 = arith.mulf %5, %6 : vector<8x1x1xf32>
    %8 = vector.broadcast %7 : vector<8x1x1xf32> to vector<8x4x256xf32>
    %9 = arith.subf %1, %8 : vector<8x4x256xf32>
    %10 = arith.mulf %9, %9 : vector<8x4x256xf32>
    %cst_5 = arith.constant dense<0.000000e+00> : vector<8x4xf32>
    %11 = vector.multi_reduction <add>, %10, %cst_5 [2] : vector<8x4x256xf32> to vector<8x4xf32>
    %12 = vector.shape_cast %11 : vector<8x4xf32> to vector<8x4x1xf32>
    %cst_6 = arith.constant dense<0.000000e+00> : vector<8x1xf32>
    %13 = vector.multi_reduction <add>, %12, %cst_6 [1] : vector<8x4x1xf32> to vector<8x1xf32>
    %14 = vector.shape_cast %13 : vector<8x1xf32> to vector<8x1x1xf32>
    %cst_7 = arith.constant 9.765625E-4 : f32
    %15 = vector.broadcast %cst_7 : f32 to vector<8x1x1xf32>
    %16 = arith.mulf %14, %15 : vector<8x1x1xf32>
    %cst_8 = arith.constant 9.99999997E-7 : f32
    %17 = vector.broadcast %cst_8 : f32 to vector<8x1x1xf32>
    %18 = arith.addf %16, %17 : vector<8x1x1xf32>
    %19 = math.rsqrt %18 : vector<8x1x1xf32>
    %c0_9 = arith.constant 0 : index
    %c0_10 = arith.constant 0 : index
    %c0_11 = arith.constant 0 : index
    %20 = vector.load %arg3[%c0_9, %c0_10, %c0_11] : memref<8x4x1xf32, #tpu.memory_space<vmem>>, vector<8x4x1xf32>
    %21 = vector.broadcast %19 : vector<8x1x1xf32> to vector<8x4x1xf32>
    %22 = arith.mulf %21, %20 : vector<8x4x1xf32>
    %c0_12 = arith.constant 0 : index
    %c0_13 = arith.constant 0 : index
    %c0_14 = arith.constant 0 : index
    %23 = vector.load %arg4[%c0_12, %c0_13, %c0_14] : memref<8x4x1xf32, #tpu.memory_space<vmem>>, vector<8x4x1xf32>
    %24 = vector.broadcast %7 : vector<8x1x1xf32> to vector<8x4x1xf32>
    %25 = arith.mulf %24, %22 : vector<8x4x1xf32>
    %26 = arith.subf %23, %25 : vector<8x4x1xf32>
    %27 = vector.broadcast %22 : vector<8x4x1xf32> to vector<8x4x256xf32>
    %28 = arith.mulf %1, %27 : vector<8x4x256xf32>
    %29 = vector.broadcast %26 : vector<8x4x1xf32> to vector<8x4x256xf32>
    %30 = arith.addf %28, %29 : vector<8x4x256xf32>
    %c0_15 = arith.constant 0 : index
    %c0_16 = arith.constant 0 : index
    %c0_17 = arith.constant 0 : index
    %c0_18 = arith.constant 0 : index
    %31 = vector.load %arg5[%c0_15, %c0_16, %c0_17, %c0_18] : memref<1x8x4x256xf32, #tpu.memory_space<vmem>>, vector<1x8x4x256xf32>
    %32 = vector.shape_cast %31 : vector<1x8x4x256xf32> to vector<8x4x256xf32>
    %33 = vector.shape_cast %30 : vector<8x4x256xf32> to vector<1x8x4x256xf32>
    tpu.vector_store %arg5[%c0_15, %c0_16, %c0_17, %c0_18], %33 {strides = array<i32>} : memref<1x8x4x256xf32, #tpu.memory_space<vmem>>, vector<1x8x4x256xf32>,
    return
  }
  func.func @transform_0(%arg0: i32, %arg1: i32) -> (i32, i32, i32, i32) {
    %c0_i32 = arith.constant 0 : i32
    %c0_i32_0 = arith.constant 0 : i32
    %c0_i32_1 = arith.constant 0 : i32
    return %arg0, %arg1, %c0_i32, %c0_i32_0 : i32, i32, i32, i32
  }
  func.func @transform_1(%arg0: i32, %arg1: i32) -> (i32, i32, i32) {
    %c0_i32 = arith.constant 0 : i32
    %c0_i32_0 = arith.constant 0 : i32
    %c0_i32_1 = arith.constant 0 : i32
    return %arg1, %c0_i32, %c0_i32_0 : i32, i32, i32
  }
  func.func @transform_2(%arg0: i32, %arg1: i32) -> (i32, i32, i32) {
    %c0_i32 = arith.constant 0 : i32
    %c0_i32_0 = arith.constant 0 : i32
    %c0_i32_1 = arith.constant 0 : i32
    return %arg1, %c0_i32, %c0_i32_0 : i32, i32, i32
  }
  func.func @transform_3(%arg0: i32, %arg1: i32) -> (i32, i32, i32, i32) {
    %c0_i32 = arith.constant 0 : i32
    %c0_i32_0 = arith.constant 0 : i32
    %c0_i32_1 = arith.constant 0 : i32
    return %arg0, %arg1, %c0_i32, %c0_i32_0 : i32, i32, i32, i32
  }
}

</mosaic_0001>

<llo_original>
// kernel: tpu_custom_call.1
$region0: #{tpu_custom_call.1}
  #allocation0 [shape = 'u32[]', space=smem, size = 0x4, offset = 0x4, fixed_abs, tag = 'smem constant byte address 0x4 - core index']
  #allocation1 [shape = 'u32[144,128]{1,0:T(1,128)}', space=vmem, size = 0x12000, scoped, tag = 'internal scratch']
  %s0 = inlined_call_operand.hbm [shape: f32[2,8,4,256], index: 0, kind: input, shape index: {}]
  %s1 = inlined_call_operand.vmem [shape: f32[8,4,1], index: 1, kind: input, shape index: {}]
  %s2 = inlined_call_operand.vmem [shape: f32[8,4,1], index: 2, kind: input, shape index: {}]
  %s3 = inlined_call_operand.hbm [shape: f32[2,8,4,256], index: 3, kind: output, shape index: {}]
  %s4 = sld [smem:[#allocation0]]
  $region49: #{tpu_custom_call.1} parent=0
    _
  %s6 = ssub.s32 1, %s4
  %s7 = scalar_select 0, %s6, %s4
  $region1: #{tpu_custom_call.1} parent=0
    #allocation2 [shape = 'u8[65536]{0}', space=vmem, size = 0x10000, scoped, tag = 'input window, operand 0']
    #allocation3 [shape = 's32[2]{0}', space=sflag, size = 0x8, scoped, tag = 'scoped memory for tpu_custom_call.1']
    #allocation4 [shape = 's32[2]{0}', space=sflag, size = 0x8, scoped, tag = 'scoped memory for tpu_custom_call.1']
    #allocation5 [shape = 'u8[65536]{0}', space=vmem, size = 0x10000, scoped, tag = 'output window, operand 0']
    %8 = vsyncpa [#allocation3], 0
    %s9 = scalar_lea.sflag [#allocation3], 1
    %10 = vsyncpa %s9, 0
    %11 = vsyncpa [#allocation4], 0
    %s12 = scalar_lea.sflag [#allocation4], 1
    %13 = vsyncpa %s12, 0
    loop: start=0, step=1, limit=4
    $region2: #{tpu_custom_call.1} parent=1 // loop_pre_header
      _
    $region3: #{tpu_custom_call.1} parent=1 // loop_header
      %s15 = sphi 0, %s19
      %p16 = scmp.ge.s32.totalorder %s15, 4
      %s22 = sphi 0, %s34
      %s23 = sphi 0, %s30
      %s24 = sphi 0, %s22
      %s25 = sphi 0, %s23
      %s26 = sphi 0, %s24
      %s27 = sphi 0, %s25
      %s39 = sphi 0, %s41
      %s42 = sphi 0, %s39
      %s43 = sphi 0, %s42
      %s59 = sphi 0, %s43
      %s65 = sphi 0, %s67
      %s68 = sphi 0, %s65
      %s69 = sphi 0, %s68
      %s85 = sphi 0, %s69
      %s91 = sphi 0, %s93
      %s94 = sphi 0, %s91
      %s95 = sphi 0, %s94
      %s111 = sphi 0, %s95
      %s119 = sphi 0, %s121
      %s122 = sphi 0, %s119
      %s123 = sphi 0, %s122
      %s139 = sphi 0, %s123
    $region4: #{tpu_custom_call.1} parent=1 // loop_header_branch
      %18 = sbr.rel (%p16) target = $region8
    $region5: #{tpu_custom_call.1} parent=1 // loop_body
      %s20 = ssub.s32 %s15, 1
      %s21 = ssub.s32 %s15, 2
      %s28 = sadd.s32 1, %s23
      %p29 = scmp.ge.s32.totalorder %s28, 1
      %s30 = scalar_select %p29, 0, %s28
      %s31 = sadd.s32 1, %s22
      %s32 = scalar_select %p29, %s31, %s22
      %p33 = scmp.ge.s32.totalorder %s32, 2
      %s34 = scalar_select %p33, 0, %s32
      %s35 = ssub.s32 %s22, %s34
      %s36 = ssub.s32 %s23, %s30
      %s37 = sor.u32 %s35, %s36
      %p38 = scmp.eq.s32.totalorder %s37, 0
      %s40 = sadd.s32 %s39, 1
      %s41 = scalar_select %p38, %s39, %s40
      %p44 = pneg %p38
      %p45 = scmp.eq.s32.totalorder %s15, 1
      %p46 = por %p44, %p45
      %p47 = scmp.ne.s32.totalorder %s39, %s42
      %p48 = scmp.eq.s32.totalorder %s15, 0
      %p49 = por %p47, %p48
      %p50 = scmp.ne.s32.totalorder %s39, %s42
      %p51 = scmp.eq.s32.totalorder %s20, 1
      %p52 = por %p50, %p51
      %p53 = scmp.ne.s32.totalorder %s42, %s43
      %p54 = scmp.eq.s32.totalorder %s20, 0
      %p55 = por %p53, %p54
      %p56 = scmp.ne.s32.totalorder %s42, %s43
      %p57 = scmp.eq.s32.totalorder %s21, 1
      %p58 = por %p56, %p57
      %p60 = scmp.ne.s32.totalorder %s43, %s59
      %p61 = scmp.eq.s32.totalorder %s21, 0
      %p62 = por %p60, %p61
      %s63 = ssub.s32 %s23, %s30
      %p64 = scmp.eq.s32.totalorder %s63, 0
      %s66 = sadd.s32 %s65, 1
      %s67 = scalar_select %p64, %s65, %s66
      %p70 = pneg %p64
      %p71 = scmp.eq.s32.totalorder %s15, 1
      %p72 = por %p70, %p71
      %p73 = scmp.ne.s32.totalorder %s65, %s68
      %p74 = scmp.eq.s32.totalorder %s15, 0
      %p75 = por %p73, %p74
      %p76 = scmp.ne.s32.totalorder %s65, %s68
      %p77 = scmp.eq.s32.totalorder %s20, 1
      %p78 = por %p76, %p77
      %p79 = scmp.ne.s32.totalorder %s68, %s69
      %p80 = scmp.eq.s32.totalorder %s20, 0
      %p81 = por %p79, %p80
      %p82 = scmp.ne.s32.totalorder %s68, %s69
      %p83 = scmp.eq.s32.totalorder %s21, 1
      %p84 = por %p82, %p83
      %p86 = scmp.ne.s32.totalorder %s69, %s85
      %p87 = scmp.eq.s32.totalorder %s21, 0
      %p88 = por %p86, %p87
      %s89 = ssub.s32 %s23, %s30
      %p90 = scmp.eq.s32.totalorder %s89, 0
      %s92 = sadd.s32 %s91, 1
      %s93 = scalar_select %p90, %s91, %s92
      %p96 = pneg %p90
      %p97 = scmp.eq.s32.totalorder %s15, 1
      %p98 = por %p96, %p97
      %p99 = scmp.ne.s32.totalorder %s91, %s94
      %p100 = scmp.eq.s32.totalorder %s15, 0
      %p101 = por %p99, %p100
      %p102 = scmp.ne.s32.totalorder %s91, %s94
      %p103 = scmp.eq.s32.totalorder %s20, 1
      %p104 = por %p102, %p103
      %p105 = scmp.ne.s32.totalorder %s94, %s95
      %p106 = scmp.eq.s32.totalorder %s20, 0
      %p107 = por %p105, %p106
      %p108 = scmp.ne.s32.totalorder %s94, %s95
      %p109 = scmp.eq.s32.totalorder %s21, 1
      %p110 = por %p108, %p109
      %p112 = scmp.ne.s32.totalorder %s95, %s111
      %p113 = scmp.eq.s32.totalorder %s21, 0
      %p114 = por %p112, %p113
      %s115 = ssub.s32 %s22, %s34
      %s116 = ssub.s32 %s23, %s30
      %s117 = sor.u32 %s115, %s116
      %p118 = scmp.eq.s32.totalorder %s117, 0
      %s120 = sadd.s32 %s119, 1
      %s121 = scalar_select %p118, %s119, %s120
      %p124 = pneg %p118
      %p125 = scmp.eq.s32.totalorder %s15, 1
      %p126 = por %p124, %p125
      %p127 = scmp.ne.s32.totalorder %s119, %s122
      %p128 = scmp.eq.s32.totalorder %s15, 0
      %p129 = por %p127, %p128
      %p130 = scmp.ne.s32.totalorder %s119, %s122
      %p131 = scmp.eq.s32.totalorder %s20, 1
      %p132 = por %p130, %p131
      %p133 = scmp.ne.s32.totalorder %s122, %s123
      %p134 = scmp.eq.s32.totalorder %s20, 0
      %p135 = por %p133, %p134
      %p136 = scmp.ne.s32.totalorder %s122, %s123
      %p137 = scmp.eq.s32.totalorder %s21, 1
      %p138 = por %p136, %p137
      %p140 = scmp.ne.s32.totalorder %s123, %s139
      %p141 = scmp.eq.s32.totalorder %s21, 0
      %p142 = por %p140, %p141
      %p143 = scmp.le.s32.totalorder 1, %s15
      %p144 = scmp.lt.s32.totalorder %s15, 3
      %p145 = pnand %p143, %p144
      %p146 = pneg %p145
      // Predicated region
      $region9: #{tpu_custom_call.1} parent=5 // pred_check
        _
      $region10: #{tpu_custom_call.1} parent=5 // pred_check_branch
        %148 = sbr.rel (%p145) target = $region12
      $region11: #{tpu_custom_call.1} parent=5 // pred_region
        %s149 = ssub.s32 %s15, 1
        // Predicated region
        $region13: #{tpu_custom_call.1} parent=11 // pred_check
          %p150 = pneg %p81
        $region14: #{tpu_custom_call.1} parent=11 // pred_check_branch
          %152 = sbr.rel (%p150) target = $region16
        $region15: #{tpu_custom_call.1} parent=11 // pred_region
          %s153 = smul.u32 8, %s25
          %p154 = scmp.lt.s32.totalorder %s153, 7
          %s155 = scalar_select %p154, %s153, 7
          %s156 = smul.addr %s155, 4
          %s157 = scalar_lea.vmem %s1, %s156
          %s158 = smul.u32 8, %s25
        $region16: #{tpu_custom_call.1} parent=11 // pred_fallthru
          _
        // Predicated region
        $region17: #{tpu_custom_call.1} parent=11 // pred_check
          %p159 = pneg %p107
        $region18: #{tpu_custom_call.1} parent=11 // pred_check_branch
          %161 = sbr.rel (%p159) target = $region20
        $region19: #{tpu_custom_call.1} parent=11 // pred_region
          %s162 = smul.u32 8, %s25
          %p163 = scmp.lt.s32.totalorder %s162, 7
          %s164 = scalar_select %p163, %s162, 7
          %s165 = smul.addr %s164, 4
          %s166 = scalar_lea.vmem %s2, %s165
          %s167 = smul.u32 8, %s25
        $region20: #{tpu_custom_call.1} parent=11 // pred_fallthru
          _
      $region12: #{tpu_custom_call.1} parent=5 // pred_fallthru
        _
      %p168 = scmp.lt.s32.totalorder %s15, 2
      // Predicated region
      $region21: #{tpu_custom_call.1} parent=5 // pred_check
        %p169 = pneg %p168
      $region22: #{tpu_custom_call.1} parent=5 // pred_check_branch
        %171 = sbr.rel (%p169) target = $region24
      $region23: #{tpu_custom_call.1} parent=5 // pred_region
        // Predicated region
        $region25: #{tpu_custom_call.1} parent=23 // pred_check
          %p172 = pneg %p49
        $region26: #{tpu_custom_call.1} parent=23 // pred_check_branch
          %174 = sbr.rel (%p172) target = $region28
        $region27: #{tpu_custom_call.1} parent=23 // pred_region
          %s175 = sand.u32 %s39, 1
          %s176 = scalar_lea.sflag [#allocation3], %s175
          %s177 = sand.u32 %s39, 1
          %s178 = smul.addr %s177, 64
          %s179 = scalar_lea.vmem [#allocation2], %s178
          %s180 = smul.u32 8, %s23
          %s182 = ssub.s32 1024, 1024
          %183 = vsyncadd %s176, %s182
          %s184 = smul.addr %s180, 2
          %s185 = smul.addr %s22, 16
          %s186 = sadd.s32 %s184, %s185
          %s187 = smul.addr %s186, 64
          %s188 = scalar_lea.hbm %s0, %s187
          %s189 = sshll.u32 %s179, 4
          %s190 = int_to_ptr.vmem [resolvable:$true] %s189
          %195 = dma.hbm_to_vmem [thread:$0]  %s188, 1024, %s190, %s176, 128, 128, 8
        $region28: #{tpu_custom_call.1} parent=23 // pred_fallthru
          _
      $region24: #{tpu_custom_call.1} parent=5 // pred_fallthru
        _
      %p196 = scmp.le.s32.totalorder 1, %s15
      %p197 = scmp.lt.s32.totalorder %s15, 3
      %p198 = pnand %p196, %p197
      %p199 = pneg %p198
      // Predicated region
      $region29: #{tpu_custom_call.1} parent=5 // pred_check
        _
      $region30: #{tpu_custom_call.1} parent=5 // pred_check_branch
        %201 = sbr.rel (%p198) target = $region32
      $region31: #{tpu_custom_call.1} parent=5 // pred_region
        %s202 = ssub.s32 %s15, 1
        %s203 = sand.u32 %s42, 1
        %s204 = scalar_lea.sflag [#allocation3], %s203
        %s205 = sand.u32 %s42, 1
        %s206 = smul.addr %s205, 64
        %s207 = scalar_lea.vmem [#allocation2], %s206
        // Predicated region
        $region33: #{tpu_custom_call.1} parent=31 // pred_check
          %p208 = pneg %p55
        $region34: #{tpu_custom_call.1} parent=31 // pred_check_branch
          %210 = sbr.rel (%p208) target = $region36
        $region35: #{tpu_custom_call.1} parent=31 // pred_region
          %211 = dma.done %s204, 1024
        $region36: #{tpu_custom_call.1} parent=31 // pred_fallthru
          _
        %s212 = sand.u32 %s42, 1
        %s213 = scalar_lea.sflag [#allocation3], %s212
        %s214 = sand.u32 %s42, 1
        %s215 = smul.addr %s214, 64
        %s216 = scalar_lea.vmem [#allocation2], %s215
        %p217 = pneg %p55
        %p218 = pneg %p52
        %s219 = smul.u32 8, %s25
        %p220 = scmp.lt.s32.totalorder %s219, 7
        %s221 = scalar_select %p220, %s219, 7
        %s222 = smul.addr %s221, 4
        %s223 = scalar_lea.vmem %s1, %s222
        %p224 = pneg %p81
        %p225 = pneg %p78
        %s226 = smul.u32 8, %s25
        %p227 = scmp.lt.s32.totalorder %s226, 7
        %s228 = scalar_select %p227, %s226, 7
        %s229 = smul.addr %s228, 4
        %s230 = scalar_lea.vmem %s2, %s229
        %p231 = pneg %p107
        %p232 = pneg %p104
        %p233 = pneg %p135
        %p234 = pneg %p132
        %s235 = sand.u32 %s122, 1
        %s236 = scalar_lea.sflag [#allocation4], %s235
        %s237 = sand.u32 %s122, 1
        %s238 = smul.addr %s237, 64
        %s239 = scalar_lea.vmem [#allocation5], %s238
        %s240 = smul.u32 8, %s25
        %s241 = smul.u32 8, %s25
        %p242 = scmp.lt.s32.totalorder %s241, 7
        %s243 = scalar_select %p242, %s241, 7
        %s244 = smul.addr %s243, 4
        %s245 = scalar_lea.vmem %s1, %s244
        %s246 = smul.u32 8, %s25
        %s247 = smul.u32 8, %s25
        %p248 = scmp.lt.s32.totalorder %s247, 7
        %s249 = scalar_select %p248, %s247, 7
        %s250 = smul.addr %s249, 4
        %s251 = scalar_lea.vmem %s2, %s250
        %s252 = smul.u32 8, %s25
        %s253 = smul.u32 8, %s25
        %v254 = vld [vmem:[%s207] sm:$0xff]
        %v255 = vld [vmem:[%s207 + $0x8] sm:$0xff]
        %v256 = vld [vmem:[%s207 + $0x10] sm:$0xff]
        %v257 = vld [vmem:[%s207 + $0x18] sm:$0xff]
        %v258 = vld [vmem:[%s207 + $0x20] sm:$0xff]
        %v259 = vld [vmem:[%s207 + $0x28] sm:$0xff]
        %v260 = vld [vmem:[%s207 + $0x30] sm:$0xff]
        %v261 = vld [vmem:[%s207 + $0x38] sm:$0xff]
        %v270 = vcombine.high %v254, %v254
        %v271 = vcombine.high %v255, %v255
        %v272 = vcombine.high %v256, %v256
        %v273 = vcombine.high %v257, %v257
        %v274 = vcombine.high %v258, %v258
        %v275 = vcombine.high %v259, %v259
        %v276 = vcombine.high %v260, %v260
        %v277 = vcombine.high %v261, %v261
        %vm286 = vcmask 1043456
        %v287 = vsel %vm286, %v254, 0.0
        %v288 = vsel %vm286, %v270, 0.0
        %v289 = vadd.f32 %v287, %v288
        %290 = vadd.xlane.f32.xlu0 %v289
        %v291 = vpop.xlane.xlu0 %290
        %v292 = vsel %vm286, %v255, 0.0
        %v293 = vsel %vm286, %v271, 0.0
        %v294 = vadd.f32 %v292, %v293
        %295 = vadd.xlane.f32.xlu0 %v294
        %v296 = vpop.xlane.xlu0 %295
        %v297 = vsel %vm286, %v256, 0.0
        %v298 = vsel %vm286, %v272, 0.0
        %v299 = vadd.f32 %v297, %v298
        %300 = vadd.xlane.f32.xlu0 %v299
        %v301 = vpop.xlane.xlu0 %300
        %v302 = vsel %vm286, %v257, 0.0
        %v303 = vsel %vm286, %v273, 0.0
        %v304 = vadd.f32 %v302, %v303
        %305 = vadd.xlane.f32.xlu0 %v304
        %v306 = vpop.xlane.xlu0 %305
        %v307 = vsel %vm286, %v258, 0.0
        %v308 = vsel %vm286, %v274, 0.0
        %v309 = vadd.f32 %v307, %v308
        %310 = vadd.xlane.f32.xlu0 %v309
        %v311 = vpop.xlane.xlu0 %310
        %v312 = vsel %vm286, %v259, 0.0
        %v313 = vsel %vm286, %v275, 0.0
        %v314 = vadd.f32 %v312, %v313
        %315 = vadd.xlane.f32.xlu0 %v314
        %v316 = vpop.xlane.xlu0 %315
        %v317 = vsel %vm286, %v260, 0.0
        %v318 = vsel %vm286, %v276, 0.0
        %v319 = vadd.f32 %v317, %v318
        %320 = vadd.xlane.f32.xlu0 %v319
        %v321 = vpop.xlane.xlu0 %320
        %v322 = vsel %vm286, %v261, 0.0
        %v323 = vsel %vm286, %v277, 0.0
        %v324 = vadd.f32 %v322, %v323
        %325 = vadd.xlane.f32.xlu0 %v324
        %v326 = vpop.xlane.xlu0 %325
        %v327 = vsel %vm286, %v291, 0.0
        %v328 = vrot.slane %v327, 4
        %v329 = vadd.f32 %v327, %v328
        %v330 = vrot.slane %v329, 2
        %v331 = vadd.f32 %v329, %v330
        %v332 = vrot.slane %v331, 1
        %v333 = vadd.f32 %v331, %v332
        %v334 = vsel %vm286, %v296, 0.0
        %v335 = vrot.slane %v334, 4
        %v336 = vadd.f32 %v334, %v335
        %v337 = vrot.slane %v336, 2
        %v338 = vadd.f32 %v336, %v337
        %v339 = vrot.slane %v338, 1
        %v340 = vadd.f32 %v338, %v339
        %v341 = vsel %vm286, %v301, 0.0
        %v342 = vrot.slane %v341, 4
        %v343 = vadd.f32 %v341, %v342
        %v344 = vrot.slane %v343, 2
        %v345 = vadd.f32 %v343, %v344
        %v346 = vrot.slane %v345, 1
        %v347 = vadd.f32 %v345, %v346
        %v348 = vsel %vm286, %v306, 0.0
        %v349 = vrot.slane %v348, 4
        %v350 = vadd.f32 %v348, %v349
        %v351 = vrot.slane %v350, 2
        %v352 = vadd.f32 %v350, %v351
        %v353 = vrot.slane %v352, 1
        %v354 = vadd.f32 %v352, %v353
        %v355 = vsel %vm286, %v311, 0.0
        %v356 = vrot.slane %v355, 4
        %v357 = vadd.f32 %v355, %v356
        %v358 = vrot.slane %v357, 2
        %v359 = vadd.f32 %v357, %v358
        %v360 = vrot.slane %v359, 1
        %v361 = vadd.f32 %v359, %v360
        %v362 = vsel %vm286, %v316, 0.0
        %v363 = vrot.slane %v362, 4
        %v364 = vadd.f32 %v362, %v363
        %v365 = vrot.slane %v364, 2
        %v366 = vadd.f32 %v364, %v365
        %v367 = vrot.slane %v366, 1
        %v368 = vadd.f32 %v366, %v367
        %v369 = vsel %vm286, %v321, 0.0
        %v370 = vrot.slane %v369, 4
        %v371 = vadd.f32 %v369, %v370
        %v372 = vrot.slane %v371, 2
        %v373 = vadd.f32 %v371, %v372
        %v374 = vrot.slane %v373, 1
        %v375 = vadd.f32 %v373, %v374
        %v376 = vsel %vm286, %v326, 0.0
        %v377 = vrot.slane %v376, 4
        %v378 = vadd.f32 %v376, %v377
        %v379 = vrot.slane %v378, 2
        %v380 = vadd.f32 %v378, %v379
        %v381 = vrot.slane %v380, 1
        %v382 = vadd.f32 %v380, %v381
        %v383 = vmul.f32 %v333, 0.0009765625
        %v384 = vmul.f32 %v340, 0.0009765625
        %v385 = vmul.f32 %v347, 0.0009765625
        %v386 = vmul.f32 %v354, 0.0009765625
        %v387 = vmul.f32 %v361, 0.0009765625
        %v388 = vmul.f32 %v368, 0.0009765625
        %v389 = vmul.f32 %v375, 0.0009765625
        %v390 = vmul.f32 %v382, 0.0009765625
        %v391 = vsub.f32 %v254, %v383
        %v392 = vsub.f32 %v255, %v384
        %v393 = vsub.f32 %v256, %v385
        %v394 = vsub.f32 %v257, %v386
        %v395 = vsub.f32 %v258, %v387
        %v396 = vsub.f32 %v259, %v388
        %v397 = vsub.f32 %v260, %v389
        %v398 = vsub.f32 %v261, %v390
        %v399 = vmul.f32 %v391, %v391
        %v400 = vmul.f32 %v392, %v392
        %v401 = vmul.f32 %v393, %v393
        %v402 = vmul.f32 %v394, %v394
        %v403 = vmul.f32 %v395, %v395
        %v404 = vmul.f32 %v396, %v396
        %v405 = vmul.f32 %v397, %v397
        %v406 = vmul.f32 %v398, %v398
        %v415 = vcombine.high %v399, %v399
        %v416 = vcombine.high %v400, %v400
        %v417 = vcombine.high %v401, %v401
        %v418 = vcombine.high %v402, %v402
        %v419 = vcombine.high %v403, %v403
        %v420 = vcombine.high %v404, %v404
        %v421 = vcombine.high %v405, %v405
        %v422 = vcombine.high %v406, %v406
        %v431 = vsel %vm286, %v399, 0.0
        %v432 = vsel %vm286, %v415, 0.0
        %v433 = vadd.f32 %v431, %v432
        %434 = vadd.xlane.f32.xlu0 %v433
        %v435 = vpop.xlane.xlu0 %434
        %v436 = vsel %vm286, %v400, 0.0
        %v437 = vsel %vm286, %v416, 0.0
        %v438 = vadd.f32 %v436, %v437
        %439 = vadd.xlane.f32.xlu0 %v438
        %v440 = vpop.xlane.xlu0 %439
        %v441 = vsel %vm286, %v401, 0.0
        %v442 = vsel %vm286, %v417, 0.0
        %v443 = vadd.f32 %v441, %v442
        %444 = vadd.xlane.f32.xlu0 %v443
        %v445 = vpop.xlane.xlu0 %444
        %v446 = vsel %vm286, %v402, 0.0
        %v447 = vsel %vm286, %v418, 0.0
        %v448 = vadd.f32 %v446, %v447
        %449 = vadd.xlane.f32.xlu0 %v448
        %v450 = vpop.xlane.xlu0 %449
        %v451 = vsel %vm286, %v403, 0.0
        %v452 = vsel %vm286, %v419, 0.0
        %v453 = vadd.f32 %v451, %v452
        %454 = vadd.xlane.f32.xlu0 %v453
        %v455 = vpop.xlane.xlu0 %454
        %v456 = vsel %vm286, %v404, 0.0
        %v457 = vsel %vm286, %v420, 0.0
        %v458 = vadd.f32 %v456, %v457
        %459 = vadd.xlane.f32.xlu0 %v458
        %v460 = vpop.xlane.xlu0 %459
        %v461 = vsel %vm286, %v405, 0.0
        %v462 = vsel %vm286, %v421, 0.0
        %v463 = vadd.f32 %v461, %v462
        %464 = vadd.xlane.f32.xlu0 %v463
        %v465 = vpop.xlane.xlu0 %464
        %v466 = vsel %vm286, %v406, 0.0
        %v467 = vsel %vm286, %v422, 0.0
        %v468 = vadd.f32 %v466, %v467
        %469 = vadd.xlane.f32.xlu0 %v468
        %v470 = vpop.xlane.xlu0 %469
        %v471 = vsel %vm286, %v435, 0.0
        %v472 = vrot.slane %v471, 4
        %v473 = vadd.f32 %v471, %v472
        %v474 = vrot.slane %v473, 2
        %v475 = vadd.f32 %v473, %v474
        %v476 = vrot.slane %v475, 1
        %v477 = vadd.f32 %v475, %v476
        %v478 = vsel %vm286, %v440, 0.0
        %v479 = vrot.slane %v478, 4
        %v480 = vadd.f32 %v478, %v479
        %v481 = vrot.slane %v480, 2
        %v482 = vadd.f32 %v480, %v481
        %v483 = vrot.slane %v482, 1
        %v484 = vadd.f32 %v482, %v483
        %v485 = vsel %vm286, %v445, 0.0
        %v486 = vrot.slane %v485, 4
        %v487 = vadd.f32 %v485, %v486
        %v488 = vrot.slane %v487, 2
        %v489 = vadd.f32 %v487, %v488
        %v490 = vrot.slane %v489, 1
        %v491 = vadd.f32 %v489, %v490
        %v492 = vsel %vm286, %v450, 0.0
        %v493 = vrot.slane %v492, 4
        %v494 = vadd.f32 %v492, %v493
        %v495 = vrot.slane %v494, 2
        %v496 = vadd.f32 %v494, %v495
        %v497 = vrot.slane %v496, 1
        %v498 = vadd.f32 %v496, %v497
        %v499 = vsel %vm286, %v455, 0.0
        %v500 = vrot.slane %v499, 4
        %v501 = vadd.f32 %v499, %v500
        %v502 = vrot.slane %v501, 2
        %v503 = vadd.f32 %v501, %v502
        %v504 = vrot.slane %v503, 1
        %v505 = vadd.f32 %v503, %v504
        %v506 = vsel %vm286, %v460, 0.0
        %v507 = vrot.slane %v506, 4
        %v508 = vadd.f32 %v506, %v507
        %v509 = vrot.slane %v508, 2
        %v510 = vadd.f32 %v508, %v509
        %v511 = vrot.slane %v510, 1
        %v512 = vadd.f32 %v510, %v511
        %v513 = vsel %vm286, %v465, 0.0
        %v514 = vrot.slane %v513, 4
        %v515 = vadd.f32 %v513, %v514
        %v516 = vrot.slane %v515, 2
        %v517 = vadd.f32 %v515, %v516
        %v518 = vrot.slane %v517, 1
        %v519 = vadd.f32 %v517, %v518
        %v520 = vsel %vm286, %v470, 0.0
        %v521 = vrot.slane %v520, 4
        %v522 = vadd.f32 %v520, %v521
        %v523 = vrot.slane %v522, 2
        %v524 = vadd.f32 %v522, %v523
        %v525 = vrot.slane %v524, 1
        %v526 = vadd.f32 %v524, %v525
        %v527 = vmul.f32 %v477, 0.0009765625
        %v528 = vmul.f32 %v484, 0.0009765625
        %v529 = vmul.f32 %v491, 0.0009765625
        %v530 = vmul.f32 %v498, 0.0009765625
        %v531 = vmul.f32 %v505, 0.0009765625
        %v532 = vmul.f32 %v512, 0.0009765625
        %v533 = vmul.f32 %v519, 0.0009765625
        %v534 = vmul.f32 %v526, 0.0009765625
        %v535 = vadd.f32 %v527, 1e-06
        %v536 = vadd.f32 %v528, 1e-06
        %v537 = vadd.f32 %v529, 1e-06
        %v538 = vadd.f32 %v530, 1e-06
        %v539 = vadd.f32 %v531, 1e-06
        %v540 = vadd.f32 %v532, 1e-06
        %v541 = vadd.f32 %v533, 1e-06
        %v542 = vadd.f32 %v534, 1e-06
        %v543 = vrsqrt.pop %v535
        %v544 = vrsqrt.pop %v536
        %v545 = vrsqrt.pop %v537
        %v546 = vrsqrt.pop %v538
        %v547 = vrsqrt.pop %v539
        %v548 = vrsqrt.pop %v540
        %v549 = vrsqrt.pop %v541
        %v550 = vrsqrt.pop %v542
        %v551 = vld [vmem:[%s245] sm:$0xf]
        %v552 = vld [vmem:[%s245 + $0x4] sm:$0xf]
        %v553 = vld [vmem:[%s245 + $0x8] sm:$0xf]
        %v554 = vld [vmem:[%s245 + $0xc] sm:$0xf]
        %v555 = vld [vmem:[%s245 + $0x10] sm:$0xf]
        %v556 = vld [vmem:[%s245 + $0x14] sm:$0xf]
        %v557 = vld [vmem:[%s245 + $0x18] sm:$0xf]
        %v558 = vld [vmem:[%s245 + $0x1c] sm:$0xf]
        %v559 = vmul.f32 %v543, %v551
        %v560 = vmul.f32 %v544, %v552
        %v561 = vmul.f32 %v545, %v553
        %v562 = vmul.f32 %v546, %v554
        %v563 = vmul.f32 %v547, %v555
        %v564 = vmul.f32 %v548, %v556
        %v565 = vmul.f32 %v549, %v557
        %v566 = vmul.f32 %v550, %v558
        %v567 = vld [vmem:[%s251] sm:$0xf]
        %v568 = vld [vmem:[%s251 + $0x4] sm:$0xf]
        %v569 = vld [vmem:[%s251 + $0x8] sm:$0xf]
        %v570 = vld [vmem:[%s251 + $0xc] sm:$0xf]
        %v571 = vld [vmem:[%s251 + $0x10] sm:$0xf]
        %v572 = vld [vmem:[%s251 + $0x14] sm:$0xf]
        %v573 = vld [vmem:[%s251 + $0x18] sm:$0xf]
        %v574 = vld [vmem:[%s251 + $0x1c] sm:$0xf]
        %v575 = vmul.f32 %v383, %v559
        %v576 = vmul.f32 %v384, %v560
        %v577 = vmul.f32 %v385, %v561
        %v578 = vmul.f32 %v386, %v562
        %v579 = vmul.f32 %v387, %v563
        %v580 = vmul.f32 %v388, %v564
        %v581 = vmul.f32 %v389, %v565
        %v582 = vmul.f32 %v390, %v566
        %v583 = vsub.f32 %v567, %v575
        %v584 = vsub.f32 %v568, %v576
        %v585 = vsub.f32 %v569, %v577
        %v586 = vsub.f32 %v570, %v578
        %v587 = vsub.f32 %v571, %v579
        %v588 = vsub.f32 %v572, %v580
        %v589 = vsub.f32 %v573, %v581
        %v590 = vsub.f32 %v574, %v582
        %592 = vset.pattern.permute.xlu0 0
        %593 = vperm.xlu0 %592, %v559
        %v594 = vpop.permute.xlu0 %593
        %596 = vset.pattern.permute.xlu0 0
        %597 = vperm.xlu0 %596, %v560
        %v598 = vpop.permute.xlu0 %597
        %600 = vset.pattern.permute.xlu0 0
        %601 = vperm.xlu0 %600, %v561
        %v602 = vpop.permute.xlu0 %601
        %604 = vset.pattern.permute.xlu0 0
        %605 = vperm.xlu0 %604, %v562
        %v606 = vpop.permute.xlu0 %605
        %608 = vset.pattern.permute.xlu0 0
        %609 = vperm.xlu0 %608, %v563
        %v610 = vpop.permute.xlu0 %609
        %612 = vset.pattern.permute.xlu0 0
        %613 = vperm.xlu0 %612, %v564
        %v614 = vpop.permute.xlu0 %613
        %616 = vset.pattern.permute.xlu0 0
        %617 = vperm.xlu0 %616, %v565
        %v618 = vpop.permute.xlu0 %617
        %620 = vset.pattern.permute.xlu0 0
        %621 = vperm.xlu0 %620, %v566
        %v622 = vpop.permute.xlu0 %621
        %v624 = vunpack.c.l.s4 839922192
        %v625 = vunpack.c.0.s8 %v624
        %v626 = vlaneseq
        %v627 = vshrl.u32 %v626, 7
        %v628 = vsub.s32 %v625, %v627
        %v629 = vrot.slane %v594, %v628
        %v631 = vunpack.c.l.s4 839922192
        %v632 = vunpack.c.0.s8 %v631
        %v633 = vlaneseq
        %v634 = vshrl.u32 %v633, 7
        %v635 = vsub.s32 %v632, %v634
        %v636 = vrot.slane %v598, %v635
        %v638 = vunpack.c.l.s4 839922192
        %v639 = vunpack.c.0.s8 %v638
        %v640 = vlaneseq
        %v641 = vshrl.u32 %v640, 7
        %v642 = vsub.s32 %v639, %v641
        %v643 = vrot.slane %v602, %v642
        %v645 = vunpack.c.l.s4 839922192
        %v646 = vunpack.c.0.s8 %v645
        %v647 = vlaneseq
        %v648 = vshrl.u32 %v647, 7
        %v649 = vsub.s32 %v646, %v648
        %v650 = vrot.slane %v606, %v649
        %v652 = vunpack.c.l.s4 839922192
        %v653 = vunpack.c.0.s8 %v652
        %v654 = vlaneseq
        %v655 = vshrl.u32 %v654, 7
        %v656 = vsub.s32 %v653, %v655
        %v657 = vrot.slane %v610, %v656
        %v659 = vunpack.c.l.s4 839922192
        %v660 = vunpack.c.0.s8 %v659
        %v661 = vlaneseq
        %v662 = vshrl.u32 %v661, 7
        %v663 = vsub.s32 %v660, %v662
        %v664 = vrot.slane %v614, %v663
        %v666 = vunpack.c.l.s4 839922192
        %v667 = vunpack.c.0.s8 %v666
        %v668 = vlaneseq
        %v669 = vshrl.u32 %v668, 7
        %v670 = vsub.s32 %v667, %v669
        %v671 = vrot.slane %v618, %v670
        %v673 = vunpack.c.l.s4 839922192
        %v674 = vunpack.c.0.s8 %v673
        %v675 = vlaneseq
        %v676 = vshrl.u32 %v675, 7
        %v677 = vsub.s32 %v674, %v676
        %v678 = vrot.slane %v622, %v677
        %v687 = vmul.f32 %v254, %v629
        %v688 = vmul.f32 %v255, %v636
        %v689 = vmul.f32 %v256, %v643
        %v690 = vmul.f32 %v257, %v650
        %v691 = vmul.f32 %v258, %v657
        %v692 = vmul.f32 %v259, %v664
        %v693 = vmul.f32 %v260, %v671
        %v694 = vmul.f32 %v261, %v678
        %696 = vset.pattern.permute.xlu0 0
        %697 = vperm.xlu0 %696, %v583
        %v698 = vpop.permute.xlu0 %697
        %700 = vset.pattern.permute.xlu0 0
        %701 = vperm.xlu0 %700, %v584
        %v702 = vpop.permute.xlu0 %701
        %704 = vset.pattern.permute.xlu0 0
        %705 = vperm.xlu0 %704, %v585
        %v706 = vpop.permute.xlu0 %705
        %708 = vset.pattern.permute.xlu0 0
        %709 = vperm.xlu0 %708, %v586
        %v710 = vpop.permute.xlu0 %709
        %712 = vset.pattern.permute.xlu0 0
        %713 = vperm.xlu0 %712, %v587
        %v714 = vpop.permute.xlu0 %713
        %716 = vset.pattern.permute.xlu0 0
        %717 = vperm.xlu0 %716, %v588
        %v718 = vpop.permute.xlu0 %717
        %720 = vset.pattern.permute.xlu0 0
        %721 = vperm.xlu0 %720, %v589
        %v722 = vpop.permute.xlu0 %721
        %724 = vset.pattern.permute.xlu0 0
        %725 = vperm.xlu0 %724, %v590
        %v726 = vpop.permute.xlu0 %725
        %v728 = vunpack.c.l.s4 839922192
        %v729 = vunpack.c.0.s8 %v728
        %v730 = vlaneseq
        %v731 = vshrl.u32 %v730, 7
        %v732 = vsub.s32 %v729, %v731
        %v733 = vrot.slane %v698, %v732
        %v735 = vunpack.c.l.s4 839922192
        %v736 = vunpack.c.0.s8 %v735
        %v737 = vlaneseq
        %v738 = vshrl.u32 %v737, 7
        %v739 = vsub.s32 %v736, %v738
        %v740 = vrot.slane %v702, %v739
        %v742 = vunpack.c.l.s4 839922192
        %v743 = vunpack.c.0.s8 %v742
        %v744 = vlaneseq
        %v745 = vshrl.u32 %v744, 7
        %v746 = vsub.s32 %v743, %v745
        %v747 = vrot.slane %v706, %v746
        %v749 = vunpack.c.l.s4 839922192
        %v750 = vunpack.c.0.s8 %v749
        %v751 = vlaneseq
        %v752 = vshrl.u32 %v751, 7
        %v753 = vsub.s32 %v750, %v752
        %v754 = vrot.slane %v710, %v753
        %v756 = vunpack.c.l.s4 839922192
        %v757 = vunpack.c.0.s8 %v756
        %v758 = vlaneseq
        %v759 = vshrl.u32 %v758, 7
        %v760 = vsub.s32 %v757, %v759
        %v761 = vrot.slane %v714, %v760
        %v763 = vunpack.c.l.s4 839922192
        %v764 = vunpack.c.0.s8 %v763
        %v765 = vlaneseq
        %v766 = vshrl.u32 %v765, 7
        %v767 = vsub.s32 %v764, %v766
        %v768 = vrot.slane %v718, %v767
        %v770 = vunpack.c.l.s4 839922192
        %v771 = vunpack.c.0.s8 %v770
        %v772 = vlaneseq
        %v773 = vshrl.u32 %v772, 7
        %v774 = vsub.s32 %v771, %v773
        %v775 = vrot.slane %v722, %v774
        %v777 = vunpack.c.l.s4 839922192
        %v778 = vunpack.c.0.s8 %v777
        %v779 = vlaneseq
        %v780 = vshrl.u32 %v779, 7
        %v781 = vsub.s32 %v778, %v780
        %v782 = vrot.slane %v726, %v781
        %v791 = vadd.f32 %v687, %v733
        %v792 = vadd.f32 %v688, %v740
        %v793 = vadd.f32 %v689, %v747
        %v794 = vadd.f32 %v690, %v754
        %v795 = vadd.f32 %v691, %v761
        %v796 = vadd.f32 %v692, %v768
        %v797 = vadd.f32 %v693, %v775
        %v798 = vadd.f32 %v694, %v782
        %799 = vst [vmem:[%s239] sm:$0xff] %v791
        %800 = vst [vmem:[%s239 + $0x8] sm:$0xff] %v792
        %801 = vst [vmem:[%s239 + $0x10] sm:$0xff] %v793
        %802 = vst [vmem:[%s239 + $0x18] sm:$0xff] %v794
        %803 = vst [vmem:[%s239 + $0x20] sm:$0xff] %v795
        %804 = vst [vmem:[%s239 + $0x28] sm:$0xff] %v796
        %805 = vst [vmem:[%s239 + $0x30] sm:$0xff] %v797
        %806 = vst [vmem:[%s239 + $0x38] sm:$0xff] %v798
        %s807 = sand.u32 %s122, 1
        %s808 = scalar_lea.sflag [#allocation4], %s807
        %s809 = sand.u32 %s122, 1
        %s810 = smul.addr %s809, 64
        %s811 = scalar_lea.vmem [#allocation5], %s810
        // Predicated region
        $region37: #{tpu_custom_call.1} parent=31 // pred_check
          %p812 = pneg %p132
        $region38: #{tpu_custom_call.1} parent=31 // pred_check_branch
          %814 = sbr.rel (%p812) target = $region40
        $region39: #{tpu_custom_call.1} parent=31 // pred_region
          %s815 = smul.u32 8, %s25
          %s817 = ssub.s32 1024, 1024
          %818 = vsyncadd %s808, %s817
          %s819 = smul.addr %s815, 2
          %s820 = smul.addr %s24, 16
          %s821 = sadd.s32 %s819, %s820
          %s822 = smul.addr %s821, 64
          %s823 = scalar_lea.hbm %s3, %s822
          %s824 = sshll.u32 %s811, 4
          %s825 = int_to_ptr.vmem [resolvable:$true] %s824
          %830 = dma.vmem_to_hbm [thread:$0]  %s825, 1024, %s823, %s808, 128, 128, 8
        $region40: #{tpu_custom_call.1} parent=31 // pred_fallthru
          _
      $region32: #{tpu_custom_call.1} parent=5 // pred_fallthru
        _
      %p831 = scmp.le.s32.totalorder 2, %s15
      // Predicated region
      $region41: #{tpu_custom_call.1} parent=5 // pred_check
        %p832 = pneg %p831
      $region42: #{tpu_custom_call.1} parent=5 // pred_check_branch
        %834 = sbr.rel (%p832) target = $region44
      $region43: #{tpu_custom_call.1} parent=5 // pred_region
        %s835 = ssub.s32 %s15, 2
        // Predicated region
        $region45: #{tpu_custom_call.1} parent=43 // pred_check
          %p836 = pneg %p138
        $region46: #{tpu_custom_call.1} parent=43 // pred_check_branch
          %838 = sbr.rel (%p836) target = $region48
        $region47: #{tpu_custom_call.1} parent=43 // pred_region
          %s839 = sand.u32 %s123, 1
          %s840 = scalar_lea.sflag [#allocation4], %s839
          %s841 = sand.u32 %s123, 1
          %s842 = smul.addr %s841, 64
          %s843 = scalar_lea.vmem [#allocation5], %s842
          %844 = dma.done %s840, 1024
        $region48: #{tpu_custom_call.1} parent=43 // pred_fallthru
          _
      $region44: #{tpu_custom_call.1} parent=5 // pred_fallthru
        _
    $region6: #{tpu_custom_call.1} parent=1 // loop_footer
      %s19 = sadd.s32 1, %s15
    $region7: #{tpu_custom_call.1} parent=1 // loop_footer_branch
      %14 = sbr.rel target = $region3
    $region8: #{tpu_custom_call.1} parent=1 // loop_exit
      _
    %845 = vsyncpa [#allocation3], 1
    %s846 = scalar_lea.sflag [#allocation3], 1
    %847 = vsyncpa %s846, 1
    %848 = vsyncpa [#allocation4], 1
    %s849 = scalar_lea.sflag [#allocation4], 1
    %850 = vsyncpa %s849, 1

</llo_original>
